<compile_context>
chip_gen: v5e
topology: v5e:2x2
jax: 0.10.0
libtpu: 0.0.40
codegen_flags: <defaults>
</compile_context>

<pallas_src>
import functools

import jax
import jax.numpy as jnp
from jax import lax
from jax.experimental import pallas as pl
from jax.experimental.pallas import tpu as pltpu


def _round_up(x, m):
    return ((x + m - 1) // m) * m


def _pick_embed_tiles(B, S, target_rows=512):
    """Pick (tb, ts) with ts | S (multiple of 8, or == S) and tb | B, ~target_rows
    rows per block, preferring >= 2 grid steps so 'parallel' semantics can use both
    TensorCores on v7x.  No padding is ever required."""
    if S % 8 == 0:
        ts = 8
        while ts * 2 <= min(S, target_rows) and S % (ts * 2) == 0:
            ts *= 2
    else:
        ts = S                      # full-S block is always layout-legal
    tb = 1
    while tb < B and B % (tb * 2) == 0 and (tb * 2) * ts <= target_rows:
        tb *= 2
    if (B // tb) * (S // ts) < 2:   # keep >= 2 grid steps for megacore when possible
        if tb > 1:
            tb //= 2
        elif ts % 16 == 0:
            ts //= 2
    return tb, ts


# ---------------------------------------------------------------------------
# Kernel 1: embedding sum + LayerNorm (LN math in f32, output dtype configurable).
# ---------------------------------------------------------------------------
def embed_layernorm_kernel(we_ref, pos_ref, seg_ref, type_ref, g_ref, b_ref, o_ref, *, eps):
    # we_ref  : (tb, ts, D) gathered word-embedding rows (f32)
    # pos_ref : (ts, D)     position-embedding rows for this seq tile (batch-invariant)
    # seg_ref : (tb, ts, 1) token-type ids as f32 in {0., 1.}
    # type_ref: (2, D)      token-type embedding table (grid-invariant)
    segf = seg_ref[...]
    t0 = type_ref[0:1, :]                              # (1, D)
    t1 = type_ref[1:2, :]                              # (1, D)
    te = t0 + segf * (t1 - t0)                         # (tb, ts, D) via broadcast
    e = we_ref[...] + pos_ref[...] + te                # (ts, D) broadcasts over tb
    mean = jnp.mean(e, axis=-1, keepdims=True)
    cen = e - mean
    var = jnp.mean(cen * cen, axis=-1, keepdims=True)
    inv = lax.rsqrt(var + eps)                         # single EUP op (free slot)
    o_ref[...] = (cen * inv * g_ref[...] + b_ref[...]).astype(o_ref.dtype)


def bert_embeddings(token_ids, seg_ids, word_emb, pos_emb, type_emb, gamma, beta,
                    *, eps=1e-12, out_dtype=jnp.float32, target_rows=512):
    B, S = token_ids.shape
    D = word_emb.shape[1]
    assert S <= pos_emb.shape[0], "sequence length exceeds max_position_encoding"
    # NOTE: out-of-range token ids are silently clamped by XLA's gather (same caveat
    # as the original jnp.take-based version).

    # Only the data-dependent word-row gather is left to XLA (single [B*S, D] stream);
    # the reshape to (B, S, D) is metadata-only.
    we = jnp.take(word_emb, token_ids.reshape(-1), axis=0).reshape(B, S, D)
    pos_sl = pos_emb[:S].astype(jnp.float32)                 # (S, D)   tiny slice
    seg3 = seg_ids.astype(jnp.float32).reshape(B, S, 1)       # (B, S, 1) tiny
    type2d = type_emb.astype(jnp.float32)                     # (2, D)
    g2d = gamma.reshape(1, D).astype(jnp.float32)
    b2d = beta.reshape(1, D).astype(jnp.float32)

    tb, ts = _pick_embed_tiles(B, S, target_rows)

    out = pl.pallas_call(
        functools.partial(embed_layernorm_kernel, eps=eps),
        out_shape=jax.ShapeDtypeStruct((B, S, D), out_dtype),
        grid_spec=pltpu.PrefetchScalarGridSpec(
            num_scalar_prefetch=0,
            grid=(B // tb, S // ts),
            in_specs=[
                pl.BlockSpec((tb, ts, D), lambda bi, si: (bi, si, 0)),  # word rows
                pl.BlockSpec((ts, D), lambda bi, si: (si, 0)),          # pos rows (batch-invariant)
                pl.BlockSpec((tb, ts, 1), lambda bi, si: (bi, si, 0)),  # seg ids
                pl.BlockSpec((2, D), lambda bi, si: (0, 0)),            # token-type table
                pl.BlockSpec((1, D), lambda bi, si: (0, 0)),            # gamma
                pl.BlockSpec((1, D), lambda bi, si: (0, 0)),            # beta
            ],
            out_specs=pl.BlockSpec((tb, ts, D), lambda bi, si: (bi, si, 0)),  # lane-dense full-D
        ),
        compiler_params=pltpu.CompilerParams(
            dimension_semantics=("parallel", "parallel")),
    )(we, pos_sl, seg3, type2d, g2d, b2d)
    return out


# ---------------------------------------------------------------------------
# Kernel 2: BertPooler dense + tanh. bf16 MXU inputs, f32 accumulation,
# bias-add and tanh in f32, cast only at the final store.
# ---------------------------------------------------------------------------
def bert_pooler_kernel(x_ref, w_ref, b_ref, o_ref):
    y = jnp.dot(x_ref[...], w_ref[...], preferred_element_type=jnp.float32)
    o_ref[...] = jnp.tanh(y + b_ref[...]).astype(o_ref.dtype)


def bert_pooler(x, w_t, bias, *, tm=None):
    """x: [M, H] (CLS rows, f32 or bf16); w_t: [H_in, H_out] pre-transposed and
    pre-cast to bf16 ONCE at param setup; bias: [H_out]."""
    M, H = x.shape
    assert w_t.shape == (H, H) and bias.shape == (H,)

    if tm is None:
        tm = min(256, _round_up(M, 16))       # multiple of 16 for bf16 sublane packing
    m_pad = _round_up(M, tm)

    x_bf = x.astype(jnp.bfloat16)             # no-op if embeddings already emit bf16
    if m_pad != M:                            # pad only the tiny [M, H] CLS slab
        x_bf = jnp.pad(x_bf, ((0, m_pad - M), (0, 0)))
    w_bf = w_t.astype(jnp.bfloat16)           # no-op: params store bf16 already
    b2d = bias.reshape(1, H).astype(jnp.float32)

    out = pl.pallas_call(
        bert_pooler_kernel,
        out_shape=jax.ShapeDtypeStruct((m_pad, H), jnp.float32),
        grid_spec=pltpu.PrefetchScalarGridSpec(
            num_scalar_prefetch=0,
            grid=(m_pad // tm,),
            in_specs=[
                pl.BlockSpec((tm, H), lambda i: (i, 0)),
                # Grid-invariant weight block: fetched once, reused across steps.
                pl.BlockSpec((H, H), lambda i: (0, 0)),
                pl.BlockSpec((1, H), lambda i: (0, 0)),
            ],
            out_specs=pl.BlockSpec((tm, H), lambda i: (i, 0)),   # lane-dense, full H
        ),
        compiler_params=pltpu.CompilerParams(dimension_semantics=("parallel",)),
    )(x_bf, w_bf, b2d)
    return out[:M]


# ---------------------------------------------------------------------------
# Full Bert forward (matching the PyTorch module's forward pass).
# ---------------------------------------------------------------------------
def bert_forward(token_ids, token_type_ids, params, *, eps=1e-12):
    # Embedding stage emits bf16 (LN math in f32): halves the write traffic of the
    # largest activation and feeds the bf16 MXU pooler path without an extra cast.
    emb = bert_embeddings(
        token_ids, token_type_ids,
        params["word_emb"], params["pos_emb"], params["type_emb"],
        params["ln_gamma"], params["ln_beta"], eps=eps, out_dtype=jnp.bfloat16)
    # Dropout(p=0.1) is identity at inference; omitted.
    # TODO(synk): TransformerEncoder / create_padding_mask source is not provided in the
    # module spec, so the encoder stage is treated as identity here.
    enc = emb
    cls = enc[:, 0, :]                        # BertPooler pools ONLY the [CLS] token
    return bert_pooler(cls, params["pooler_w_t_bf16"], params["pooler_b"])


if __name__ == "__main__":
    # Small shapes consistent with the module: batch=2, seq=8, dim_embed=128.
    batch, seq, dim_embed = 2, 8, 128
    vocab_size, max_seq_len = 32, 16
    eps = 1e-12

    key = jax.random.PRNGKey(0)
    (k_tok, k_seg, k_we, k_pe, k_te, k_g, k_b, k_pw, k_pb) = jax.random.split(key, 9)

    token_ids = jax.random.randint(k_tok, (batch, seq), 0, vocab_size, dtype=jnp.int32)
    seg_ids = jax.random.randint(k_seg, (batch, seq), 0, 2, dtype=jnp.int32)

    word_emb = jax.random.normal(k_we, (vocab_size, dim_embed), dtype=jnp.float32) * 0.02
    pos_emb = jax.random.normal(k_pe, (max_seq_len, dim_embed), dtype=jnp.float32) * 0.02
    type_emb = jax.random.normal(k_te, (2, dim_embed), dtype=jnp.float32) * 0.02
    ln_gamma = 1.0 + 0.1 * jax.random.normal(k_g, (dim_embed,), dtype=jnp.float32)
    ln_beta = 0.1 * jax.random.normal(k_b, (dim_embed,), dtype=jnp.float32)

    # PyTorch Linear layout: weight [out, in]; bias [out].  Transpose AND cast to bf16
    # ONCE here at param setup (outside the hot path) so every forward runs a plain
    # bf16 x @ W matmul on the MXU with no per-call weight prep.
    pooler_w = jax.random.normal(k_pw, (dim_embed, dim_embed), dtype=jnp.float32) * 0.02
    pooler_b = 0.02 * jax.random.normal(k_pb, (dim_embed,), dtype=jnp.float32)

    params = dict(word_emb=word_emb, pos_emb=pos_emb, type_emb=type_emb,
                  ln_gamma=ln_gamma, ln_beta=ln_beta,
                  pooler_w_t_bf16=pooler_w.T.astype(jnp.bfloat16),
                  pooler_b=pooler_b)

    pooled = bert_forward(token_ids, seg_ids, params, eps=eps)
    jax.block_until_ready(pooled)
    assert pooled.shape == (batch, dim_embed)

    # ----- pure-JAX reference (same forward semantics, all f32) -----
    pos_ids = jnp.broadcast_to(jnp.arange(seq)[None, :], (batch, seq))
    e = (jnp.take(word_emb, token_ids.reshape(-1), axis=0)
         + jnp.take(pos_emb, pos_ids.reshape(-1), axis=0)
         + jnp.take(type_emb, seg_ids.reshape(-1), axis=0)).reshape(batch, seq, dim_embed)
    mean = e.mean(-1, keepdims=True)
    var = ((e - mean) ** 2).mean(-1, keepdims=True)
    ref_emb = (e - mean) / jnp.sqrt(var + eps) * ln_gamma + ln_beta
    ref_pooled = jnp.tanh(ref_emb[:, 0, :] @ pooler_w.T + pooler_b)

    # Embedding/LayerNorm path in f32 mode -> tight tolerance.
    emb_out = bert_embeddings(token_ids, seg_ids, word_emb, pos_emb, type_emb,
                              ln_gamma, ln_beta, eps=eps, out_dtype=jnp.float32)
    assert jnp.allclose(emb_out, ref_emb, atol=1e-5, rtol=1e-5), "embeddings mismatch"
    # Forward path uses bf16 embeddings + bf16 MXU pooler inputs with f32 accumulation
    # -> looser tolerance vs the all-f32 reference.
    assert jnp.allclose(pooled, ref_pooled, atol=2e-2, rtol=2e-2), "pooler mismatch"

    print("KERNEL_OK")
</pallas_src>

<mosaic_0001>
module attributes {stable_mosaic.version = 11 : i64} {
  func.func @embed_layernorm_kernel(%arg0: i32, %arg1: i32, %arg2: memref<1x8x128xf32, #tpu.memory_space<vmem>>, %arg3: memref<8x128xf32, #tpu.memory_space<vmem>>, %arg4: memref<1x8x1xf32, #tpu.memory_space<vmem>>, %arg5: memref<2x128xf32, #tpu.memory_space<vmem>>, %arg6: memref<1x128xf32, #tpu.memory_space<vmem>>, %arg7: memref<1x128xf32, #tpu.memory_space<vmem>>, %arg8: memref<1x8x128xbf16, #tpu.memory_space<vmem>>) attributes {dimension_semantics = [#tpu.dimension_semantics<parallel>, #tpu.dimension_semantics<parallel>], iteration_bounds = array<i64: 2, 1>, scalar_prefetch = 0 : i64, scratch_operands = 0 : i64, tpu.core_type = #tpu.core_type<tc>, window_params = [{transform_indices = @transform_0, window_bounds = array<i64: 1, 8, 128>}, {transform_indices = @transform_1, window_bounds = array<i64: 8, 128>}, {transform_indices = @transform_2, window_bounds = array<i64: 1, 8, 1>}, {pipeline_mode = #tpu.pipeline_mode<synchronous>, transform_indices = @transform_3, window_bounds = array<i64: 2, 128>}, {pipeline_mode = #tpu.pipeline_mode<synchronous>, transform_indices = @transform_4, window_bounds = array<i64: 1, 128>}, {pipeline_mode = #tpu.pipeline_mode<synchronous>, transform_indices = @transform_5, window_bounds = array<i64: 1, 128>}, {transform_indices = @transform_6, window_bounds = array<i64: 1, 8, 128>}]} {
    %c0 = arith.constant 0 : index
    %c0_0 = arith.constant 0 : index
    %c0_1 = arith.constant 0 : index
    %0 = vector.load %arg4[%c0, %c0_0, %c0_1] : memref<1x8x1xf32, #tpu.memory_space<vmem>>, vector<1x8x1xf32>
    %c0_2 = arith.constant 0 : index
    %c0_3 = arith.constant 0 : index
    %1 = vector.load %arg5[%c0_2, %c0_3] : memref<2x128xf32, #tpu.memory_space<vmem>>, vector<1x128xf32>
    %c1 = arith.constant 1 : index
    %c0_4 = arith.constant 0 : index
    %2 = vector.load %arg5[%c1, %c0_4] : memref<2x128xf32, #tpu.memory_space<vmem>>, vector<1x128xf32>
    %3 = arith.subf %2, %1 : vector<1x128xf32>
    %4 = vector.shape_cast %3 : vector<1x128xf32> to vector<1x1x128xf32>
    %5 = vector.broadcast %0 : vector<1x8x1xf32> to vector<1x8x128xf32>
    %6 = vector.broadcast %4 : vector<1x1x128xf32> to vector<1x8x128xf32>
    %7 = arith.mulf %5, %6 : vector<1x8x128xf32>
    %8 = vector.shape_cast %1 : vector<1x128xf32> to vector<1x1x128xf32>
    %9 = vector.broadcast %8 : vector<1x1x128xf32> to vector<1x8x128xf32>
    %10 = arith.addf %9, %7 : vector<1x8x128xf32>
    %c0_5 = arith.constant 0 : index
    %c0_6 = arith.constant 0 : index
    %c0_7 = arith.constant 0 : index
    %11 = vector.load %arg2[%c0_5, %c0_6, %c0_7] : memref<1x8x128xf32, #tpu.memory_space<vmem>>, vector<1x8x128xf32>
    %c0_8 = arith.constant 0 : index
    %c0_9 = arith.constant 0 : index
    %12 = vector.load %arg3[%c0_8, %c0_9] : memref<8x128xf32, #tpu.memory_space<vmem>>, vector<8x128xf32>
    %13 = vector.shape_cast %12 : vector<8x128xf32> to vector<1x8x128xf32>
    %14 = arith.addf %11, %13 : vector<1x8x128xf32>
    %15 = arith.addf %14, %10 : vector<1x8x128xf32>
    %cst = arith.constant dense<0.000000e+00> : vector<1x8xf32>
    %16 = vector.multi_reduction <add>, %15, %cst [2] : vector<1x8x128xf32> to vector<1x8xf32>
    %17 = vector.shape_cast %16 : vector<1x8xf32> to vector<1x8x1xf32>
    %cst_10 = arith.constant 1.280000e+02 : f32
    %18 = vector.broadcast %cst_10 : f32 to vector<1x8x1xf32>
    %19 = arith.divf %17, %18 : vector<1x8x1xf32>
    %20 = vector.broadcast %19 : vector<1x8x1xf32> to vector<1x8x128xf32>
    %21 = arith.subf %15, %20 : vector<1x8x128xf32>
    %22 = arith.mulf %21, %21 : vector<1x8x128xf32>
    %cst_11 = arith.constant dense<0.000000e+00> : vector<1x8xf32>
    %23 = vector.multi_reduction <add>, %22, %cst_11 [2] : vector<1x8x128xf32> to vector<1x8xf32>
    %24 = vector.shape_cast %23 : vector<1x8xf32> to vector<1x8x1xf32>
    %cst_12 = arith.constant 1.280000e+02 : f32
    %25 = vector.broadcast %cst_12 : f32 to vector<1x8x1xf32>
    %26 = arith.divf %24, %25 : vector<1x8x1xf32>
    %cst_13 = arith.constant 9.99999996E-13 : f32
    %27 = vector.broadcast %cst_13 : f32 to vector<1x8x1xf32>
    %28 = arith.addf %26, %27 : vector<1x8x1xf32>
    %29 = math.rsqrt %28 : vector<1x8x1xf32>
    %30 = vector.broadcast %29 : vector<1x8x1xf32> to vector<1x8x128xf32>
    %31 = arith.mulf %21, %30 : vector<1x8x128xf32>
    %c0_14 = arith.constant 0 : index
    %c0_15 = arith.constant 0 : index
    %32 = vector.load %arg6[%c0_14, %c0_15] : memref<1x128xf32, #tpu.memory_space<vmem>>, vector<1x128xf32>
    %33 = vector.shape_cast %32 : vector<1x128xf32> to vector<1x1x128xf32>
    %34 = vector.broadcast %33 : vector<1x1x128xf32> to vector<1x8x128xf32>
    %35 = arith.mulf %31, %34 : vector<1x8x128xf32>
    %c0_16 = arith.constant 0 : index
    %c0_17 = arith.constant 0 : index
    %36 = vector.load %arg7[%c0_16, %c0_17] : memref<1x128xf32, #tpu.memory_space<vmem>>, vector<1x128xf32>
    %37 = vector.shape_cast %36 : vector<1x128xf32> to vector<1x1x128xf32>
    %38 = vector.broadcast %37 : vector<1x1x128xf32> to vector<1x8x128xf32>
    %39 = arith.addf %35, %38 : vector<1x8x128xf32>
    %40 = arith.truncf %39 : vector<1x8x128xf32> to vector<1x8x128xbf16>
    %c0_18 = arith.constant 0 : index
    %c0_19 = arith.constant 0 : index
    %c0_20 = arith.constant 0 : index
    %41 = vector.load %arg8[%c0_18, %c0_19, %c0_20] : memref<1x8x128xbf16, #tpu.memory_space<vmem>>, vector<1x8x128xbf16>
    tpu.vector_store %arg8[%c0_18, %c0_19, %c0_20], %40 {strides = array<i32>} : memref<1x8x128xbf16, #tpu.memory_space<vmem>>, vector<1x8x128xbf16>,
    return
  }
  func.func @transform_0(%arg0: i32, %arg1: i32) -> (i32, i32, i32) {
    %c0_i32 = arith.constant 0 : i32
    %c0_i32_0 = arith.constant 0 : i32
    return %arg0, %arg1, %c0_i32 : i32, i32, i32
  }
  func.func @transform_1(%arg0: i32, %arg1: i32) -> (i32, i32) {
    %c0_i32 = arith.constant 0 : i32
    %c0_i32_0 = arith.constant 0 : i32
    return %arg1, %c0_i32 : i32, i32
  }
  func.func @transform_2(%arg0: i32, %arg1: i32) -> (i32, i32, i32) {
    %c0_i32 = arith.constant 0 : i32
    %c0_i32_0 = arith.constant 0 : i32
    return %arg0, %arg1, %c0_i32 : i32, i32, i32
  }
  func.func @transform_3(%arg0: i32, %arg1: i32) -> (i32, i32) {
    %c0_i32 = arith.constant 0 : i32
    %c0_i32_0 = arith.constant 0 : i32
    %c0_i32_1 = arith.constant 0 : i32
    return %c0_i32, %c0_i32_0 : i32, i32
  }
  func.func @transform_4(%arg0: i32, %arg1: i32) -> (i32, i32) {
    %c0_i32 = arith.constant 0 : i32
    %c0_i32_0 = arith.constant 0 : i32
    %c0_i32_1 = arith.constant 0 : i32
    return %c0_i32, %c0_i32_0 : i32, i32
  }
  func.func @transform_5(%arg0: i32, %arg1: i32) -> (i32, i32) {
    %c0_i32 = arith.constant 0 : i32
    %c0_i32_0 = arith.constant 0 : i32
    %c0_i32_1 = arith.constant 0 : i32
    return %c0_i32, %c0_i32_0 : i32, i32
  }
  func.func @transform_6(%arg0: i32, %arg1: i32) -> (i32, i32, i32) {
    %c0_i32 = arith.constant 0 : i32
    %c0_i32_0 = arith.constant 0 : i32
    return %arg0, %arg1, %c0_i32 : i32, i32, i32
  }
}

</mosaic_0001>

<llo_original>
// kernel: tpu_custom_call.1
$region0: #{tpu_custom_call.1}
  #allocation0 [shape = 'u32[]', space=smem, size = 0x4, offset = 0x4, fixed_abs, tag = 'smem constant byte address 0x4 - core index']
  #allocation1 [shape = 'u32[72,128]{1,0:T(1,128)}', space=vmem, size = 0x9000, scoped, tag = 'internal scratch']
  %s0 = inlined_call_operand.vmem [shape: f32[2,8,128], index: 0, kind: input, shape index: {}]
  %s1 = inlined_call_operand.hbm [shape: f32[8,128], index: 1, kind: input, shape index: {}]
  %s2 = inlined_call_operand.vmem [shape: f32[2,8,1], index: 2, kind: input, shape index: {}]
  %s3 = inlined_call_operand.vmem [shape: f32[2,128], index: 3, kind: input, shape index: {}]
  %s4 = inlined_call_operand.vmem [shape: f32[1,128], index: 4, kind: input, shape index: {}]
  %s5 = inlined_call_operand.vmem [shape: f32[1,128], index: 5, kind: input, shape index: {}]
  %s6 = inlined_call_operand.hbm [shape: bf16[2,8,128], index: 6, kind: output, shape index: {}]
  %s7 = sld [smem:[#allocation0]]
  $region61: #{tpu_custom_call.1} parent=0
    _
  %s9 = ssub.s32 1, %s7
  %s10 = scalar_select 0, %s9, %s7
  $region1: #{tpu_custom_call.1} parent=0
    #allocation2 [shape = 'u8[4096]{0}', space=vmem, size = 0x1000, scoped, tag = 'input window, operand 1, single buffered']
    #allocation3 [shape = 's32[2]{0}', space=sflag, size = 0x8, scoped, tag = 'scoped memory for tpu_custom_call.1']
    #allocation4 [shape = 's32[2]{0}', space=sflag, size = 0x8, scoped, tag = 'scoped memory for tpu_custom_call.1']
    #allocation5 [shape = 'u8[4096]{0}', space=vmem, size = 0x1000, scoped, tag = 'output window, operand 0']
    %11 = vsyncpa [#allocation3], 0
    %12 = vsyncpa [#allocation4], 0
    %s13 = scalar_lea.sflag [#allocation4], 1
    %14 = vsyncpa %s13, 0
    loop: start=0, step=1, limit=4
    $region2: #{tpu_custom_call.1} parent=1 // loop_pre_header
      _
    $region3: #{tpu_custom_call.1} parent=1 // loop_header
      %s16 = sphi 0, %s20
      %p17 = scmp.ge.s32.totalorder %s16, 4
      %s23 = sphi 0, %s35
      %s24 = sphi 0, %s31
      %s25 = sphi 0, %s23
      %s26 = sphi 0, %s24
      %s27 = sphi 0, %s25
      %s28 = sphi 0, %s26
      %s40 = sphi 0, %s42
      %s43 = sphi 0, %s40
      %s44 = sphi 0, %s43
      %s60 = sphi 0, %s44
      %s66 = sphi 0, %s68
      %s69 = sphi 0, %s66
      %s70 = sphi 0, %s69
      %s86 = sphi 0, %s70
      %s94 = sphi 0, %s96
      %s97 = sphi 0, %s94
      %s98 = sphi 0, %s97
      %s114 = sphi 0, %s98
      %s118 = sphi 0, %s118
      %s120 = sphi 0, %s118
      %s121 = sphi 0, %s120
      %s135 = sphi 0, %s121
      %s139 = sphi 0, %s139
      %s141 = sphi 0, %s139
      %s142 = sphi 0, %s141
      %s156 = sphi 0, %s142
      %s160 = sphi 0, %s160
      %s162 = sphi 0, %s160
      %s163 = sphi 0, %s162
      %s177 = sphi 0, %s163
      %s185 = sphi 0, %s187
      %s188 = sphi 0, %s185
      %s189 = sphi 0, %s188
      %s205 = sphi 0, %s189
    $region4: #{tpu_custom_call.1} parent=1 // loop_header_branch
      %19 = sbr.rel (%p17) target = $region8
    $region5: #{tpu_custom_call.1} parent=1 // loop_body
      %s21 = ssub.s32 %s16, 1
      %s22 = ssub.s32 %s16, 2
      %s29 = sadd.s32 1, %s24
      %p30 = scmp.ge.s32.totalorder %s29, 1
      %s31 = scalar_select %p30, 0, %s29
      %s32 = sadd.s32 1, %s23
      %s33 = scalar_select %p30, %s32, %s23
      %p34 = scmp.ge.s32.totalorder %s33, 2
      %s35 = scalar_select %p34, 0, %s33
      %s36 = ssub.s32 %s23, %s35
      %s37 = ssub.s32 %s24, %s31
      %s38 = sor.u32 %s36, %s37
      %p39 = scmp.eq.s32.totalorder %s38, 0
      %s41 = sadd.s32 %s40, 1
      %s42 = scalar_select %p39, %s40, %s41
      %p45 = pneg %p39
      %p46 = scmp.eq.s32.totalorder %s16, 1
      %p47 = por %p45, %p46
      %p48 = scmp.ne.s32.totalorder %s40, %s43
      %p49 = scmp.eq.s32.totalorder %s16, 0
      %p50 = por %p48, %p49
      %p51 = scmp.ne.s32.totalorder %s40, %s43
      %p52 = scmp.eq.s32.totalorder %s21, 1
      %p53 = por %p51, %p52
      %p54 = scmp.ne.s32.totalorder %s43, %s44
      %p55 = scmp.eq.s32.totalorder %s21, 0
      %p56 = por %p54, %p55
      %p57 = scmp.ne.s32.totalorder %s43, %s44
      %p58 = scmp.eq.s32.totalorder %s22, 1
      %p59 = por %p57, %p58
      %p61 = scmp.ne.s32.totalorder %s44, %s60
      %p62 = scmp.eq.s32.totalorder %s22, 0
      %p63 = por %p61, %p62
      %s64 = ssub.s32 %s24, %s31
      %p65 = scmp.eq.s32.totalorder %s64, 0
      %s67 = sadd.s32 %s66, 1
      %s68 = scalar_select %p65, %s66, %s67
      %p71 = pneg %p65
      %p72 = scmp.eq.s32.totalorder %s16, 1
      %p73 = por %p71, %p72
      %p74 = scmp.ne.s32.totalorder %s66, %s69
      %p75 = scmp.eq.s32.totalorder %s16, 0
      %p76 = por %p74, %p75
      %p77 = scmp.ne.s32.totalorder %s66, %s69
      %p78 = scmp.eq.s32.totalorder %s21, 1
      %p79 = por %p77, %p78
      %p80 = scmp.ne.s32.totalorder %s69, %s70
      %p81 = scmp.eq.s32.totalorder %s21, 0
      %p82 = por %p80, %p81
      %p83 = scmp.ne.s32.totalorder %s69, %s70
      %p84 = scmp.eq.s32.totalorder %s22, 1
      %p85 = por %p83, %p84
      %p87 = scmp.ne.s32.totalorder %s70, %s86
      %p88 = scmp.eq.s32.totalorder %s22, 0
      %p89 = por %p87, %p88
      %s90 = ssub.s32 %s23, %s35
      %s91 = ssub.s32 %s24, %s31
      %s92 = sor.u32 %s90, %s91
      %p93 = scmp.eq.s32.totalorder %s92, 0
      %s95 = sadd.s32 %s94, 1
      %s96 = scalar_select %p93, %s94, %s95
      %p99 = pneg %p93
      %p100 = scmp.eq.s32.totalorder %s16, 1
      %p101 = por %p99, %p100
      %p102 = scmp.ne.s32.totalorder %s94, %s97
      %p103 = scmp.eq.s32.totalorder %s16, 0
      %p104 = por %p102, %p103
      %p105 = scmp.ne.s32.totalorder %s94, %s97
      %p106 = scmp.eq.s32.totalorder %s21, 1
      %p107 = por %p105, %p106
      %p108 = scmp.ne.s32.totalorder %s97, %s98
      %p109 = scmp.eq.s32.totalorder %s21, 0
      %p110 = por %p108, %p109
      %p111 = scmp.ne.s32.totalorder %s97, %s98
      %p112 = scmp.eq.s32.totalorder %s22, 1
      %p113 = por %p111, %p112
      %p115 = scmp.ne.s32.totalorder %s98, %s114
      %p116 = scmp.eq.s32.totalorder %s22, 0
      %p117 = por %p115, %p116
      %s119 = sadd.s32 %s118, 1
      %p122 = scmp.eq.s32.totalorder %s16, 1
      %p123 = scmp.ne.s32.totalorder %s118, %s120
      %p124 = scmp.eq.s32.totalorder %s16, 0
      %p125 = por %p123, %p124
      %p126 = scmp.ne.s32.totalorder %s118, %s120
      %p127 = scmp.eq.s32.totalorder %s21, 1
      %p128 = por %p126, %p127
      %p129 = scmp.ne.s32.totalorder %s120, %s121
      %p130 = scmp.eq.s32.totalorder %s21, 0
      %p131 = por %p129, %p130
      %p132 = scmp.ne.s32.totalorder %s120, %s121
      %p133 = scmp.eq.s32.totalorder %s22, 1
      %p134 = por %p132, %p133
      %p136 = scmp.ne.s32.totalorder %s121, %s135
      %p137 = scmp.eq.s32.totalorder %s22, 0
      %p138 = por %p136, %p137
      %s140 = sadd.s32 %s139, 1
      %p143 = scmp.eq.s32.totalorder %s16, 1
      %p144 = scmp.ne.s32.totalorder %s139, %s141
      %p145 = scmp.eq.s32.totalorder %s16, 0
      %p146 = por %p144, %p145
      %p147 = scmp.ne.s32.totalorder %s139, %s141
      %p148 = scmp.eq.s32.totalorder %s21, 1
      %p149 = por %p147, %p148
      %p150 = scmp.ne.s32.totalorder %s141, %s142
      %p151 = scmp.eq.s32.totalorder %s21, 0
      %p152 = por %p150, %p151
      %p153 = scmp.ne.s32.totalorder %s141, %s142
      %p154 = scmp.eq.s32.totalorder %s22, 1
      %p155 = por %p153, %p154
      %p157 = scmp.ne.s32.totalorder %s142, %s156
      %p158 = scmp.eq.s32.totalorder %s22, 0
      %p159 = por %p157, %p158
      %s161 = sadd.s32 %s160, 1
      %p164 = scmp.eq.s32.totalorder %s16, 1
      %p165 = scmp.ne.s32.totalorder %s160, %s162
      %p166 = scmp.eq.s32.totalorder %s16, 0
      %p167 = por %p165, %p166
      %p168 = scmp.ne.s32.totalorder %s160, %s162
      %p169 = scmp.eq.s32.totalorder %s21, 1
      %p170 = por %p168, %p169
      %p171 = scmp.ne.s32.totalorder %s162, %s163
      %p172 = scmp.eq.s32.totalorder %s21, 0
      %p173 = por %p171, %p172
      %p174 = scmp.ne.s32.totalorder %s162, %s163
      %p175 = scmp.eq.s32.totalorder %s22, 1
      %p176 = por %p174, %p175
      %p178 = scmp.ne.s32.totalorder %s163, %s177
      %p179 = scmp.eq.s32.totalorder %s22, 0
      %p180 = por %p178, %p179
      %s181 = ssub.s32 %s23, %s35
      %s182 = ssub.s32 %s24, %s31
      %s183 = sor.u32 %s181, %s182
      %p184 = scmp.eq.s32.totalorder %s183, 0
      %s186 = sadd.s32 %s185, 1
      %s187 = scalar_select %p184, %s185, %s186
      %p190 = pneg %p184
      %p191 = scmp.eq.s32.totalorder %s16, 1
      %p192 = por %p190, %p191
      %p193 = scmp.ne.s32.totalorder %s185, %s188
      %p194 = scmp.eq.s32.totalorder %s16, 0
      %p195 = por %p193, %p194
      %p196 = scmp.ne.s32.totalorder %s185, %s188
      %p197 = scmp.eq.s32.totalorder %s21, 1
      %p198 = por %p196, %p197
      %p199 = scmp.ne.s32.totalorder %s188, %s189
      %p200 = scmp.eq.s32.totalorder %s21, 0
      %p201 = por %p199, %p200
      %p202 = scmp.ne.s32.totalorder %s188, %s189
      %p203 = scmp.eq.s32.totalorder %s22, 1
      %p204 = por %p202, %p203
      %p206 = scmp.ne.s32.totalorder %s189, %s205
      %p207 = scmp.eq.s32.totalorder %s22, 0
      %p208 = por %p206, %p207
      %p209 = scmp.le.s32.totalorder 1, %s16
      %p210 = scmp.lt.s32.totalorder %s16, 3
      %p211 = pnand %p209, %p210
      %p212 = pneg %p211
      // Predicated region
      $region9: #{tpu_custom_call.1} parent=5 // pred_check
        _
      $region10: #{tpu_custom_call.1} parent=5 // pred_check_branch
        %214 = sbr.rel (%p211) target = $region12
      $region11: #{tpu_custom_call.1} parent=5 // pred_region
        %s215 = ssub.s32 %s16, 1
        // Predicated region
        $region13: #{tpu_custom_call.1} parent=11 // pred_check
          %p216 = pneg %p82
        $region14: #{tpu_custom_call.1} parent=11 // pred_check_branch
          %218 = sbr.rel (%p216) target = $region16
        $region15: #{tpu_custom_call.1} parent=11 // pred_region
          %220 = vsyncadd [#allocation3], 0
          %s221 = smul.addr %s26, 8
          %s222 = scalar_lea.hbm %s1, %s221
          %s224 = sshll.u32 %s222, 4
          %s225 = int_to_ptr.hbm [resolvable:$true] %s224
          %s226 = sshll.u32 [#allocation2], 4
          %s227 = int_to_ptr.vmem [resolvable:$true] %s226
          %229 = dma.hbm_to_vmem [thread:$0]  %s225, 128, %s227, [#allocation3]
        $region16: #{tpu_custom_call.1} parent=11 // pred_fallthru
          _
        // Predicated region
        $region17: #{tpu_custom_call.1} parent=11 // pred_check
          %p230 = pneg %p131
        $region18: #{tpu_custom_call.1} parent=11 // pred_check_branch
          %232 = sbr.rel (%p230) target = $region20
        $region19: #{tpu_custom_call.1} parent=11 // pred_region
          _
        $region20: #{tpu_custom_call.1} parent=11 // pred_fallthru
          _
        // Predicated region
        $region21: #{tpu_custom_call.1} parent=11 // pred_check
          %p233 = pneg %p152
        $region22: #{tpu_custom_call.1} parent=11 // pred_check_branch
          %235 = sbr.rel (%p233) target = $region24
        $region23: #{tpu_custom_call.1} parent=11 // pred_region
          _
        $region24: #{tpu_custom_call.1} parent=11 // pred_fallthru
          _
        // Predicated region
        $region25: #{tpu_custom_call.1} parent=11 // pred_check
          %p236 = pneg %p173
        $region26: #{tpu_custom_call.1} parent=11 // pred_check_branch
          %238 = sbr.rel (%p236) target = $region28
        $region27: #{tpu_custom_call.1} parent=11 // pred_region
          _
        $region28: #{tpu_custom_call.1} parent=11 // pred_fallthru
          _
      $region12: #{tpu_custom_call.1} parent=5 // pred_fallthru
        _
      %p239 = scmp.lt.s32.totalorder %s16, 2
      // Predicated region
      $region29: #{tpu_custom_call.1} parent=5 // pred_check
        %p240 = pneg %p239
      $region30: #{tpu_custom_call.1} parent=5 // pred_check_branch
        %242 = sbr.rel (%p240) target = $region32
      $region31: #{tpu_custom_call.1} parent=5 // pred_region
        // Predicated region
        $region33: #{tpu_custom_call.1} parent=31 // pred_check
          %p243 = pneg %p50
        $region34: #{tpu_custom_call.1} parent=31 // pred_check_branch
          %245 = sbr.rel (%p243) target = $region36
        $region35: #{tpu_custom_call.1} parent=31 // pred_region
          %p246 = scmp.lt.s32.totalorder %s23, 1
          %s247 = scalar_select %p246, %s23, 1
          %p248 = scmp.lt.s32.totalorder %s24, 0
          %s249 = scalar_select %p248, %s24, 0
          %s250 = sadd.s32 %s249, %s247
          %s251 = smul.addr %s250, 8
          %s252 = scalar_lea.vmem %s0, %s251
        $region36: #{tpu_custom_call.1} parent=31 // pred_fallthru
          _
        // Predicated region
        $region37: #{tpu_custom_call.1} parent=31 // pred_check
          %p253 = pneg %p104
        $region38: #{tpu_custom_call.1} parent=31 // pred_check_branch
          %255 = sbr.rel (%p253) target = $region40
        $region39: #{tpu_custom_call.1} parent=31 // pred_region
          %p256 = scmp.lt.s32.totalorder %s23, 1
          %s257 = scalar_select %p256, %s23, 1
          %p258 = scmp.lt.s32.totalorder %s24, 0
          %s259 = scalar_select %p258, %s24, 0
          %s260 = sadd.s32 %s259, %s257
          %s261 = smul.addr %s260, 8
          %s262 = scalar_lea.vmem %s2, %s261
        $region40: #{tpu_custom_call.1} parent=31 // pred_fallthru
          _
      $region32: #{tpu_custom_call.1} parent=5 // pred_fallthru
        _
      %p263 = scmp.le.s32.totalorder 1, %s16
      %p264 = scmp.lt.s32.totalorder %s16, 3
      %p265 = pnand %p263, %p264
      %p266 = pneg %p265
      // Predicated region
      $region41: #{tpu_custom_call.1} parent=5 // pred_check
        _
      $region42: #{tpu_custom_call.1} parent=5 // pred_check_branch
        %268 = sbr.rel (%p265) target = $region44
      $region43: #{tpu_custom_call.1} parent=5 // pred_region
        %s269 = ssub.s32 %s16, 1
        // Predicated region
        $region45: #{tpu_custom_call.1} parent=43 // pred_check
          %p270 = pneg %p82
        $region46: #{tpu_custom_call.1} parent=43 // pred_check_branch
          %272 = sbr.rel (%p270) target = $region48
        $region47: #{tpu_custom_call.1} parent=43 // pred_region
          %274 = dma.done [#allocation3], 128
        $region48: #{tpu_custom_call.1} parent=43 // pred_fallthru
          _
        %p275 = scmp.lt.s32.totalorder %s25, 1
        %s276 = scalar_select %p275, %s25, 1
        %p277 = scmp.lt.s32.totalorder %s26, 0
        %s278 = scalar_select %p277, %s26, 0
        %s279 = sadd.s32 %s278, %s276
        %s280 = smul.addr %s279, 8
        %s281 = scalar_lea.vmem %s0, %s280
        %p282 = pneg %p56
        %p283 = pneg %p53
        %p284 = pneg %p82
        %p285 = pneg %p79
        %p286 = scmp.lt.s32.totalorder %s25, 1
        %s287 = scalar_select %p286, %s25, 1
        %p288 = scmp.lt.s32.totalorder %s26, 0
        %s289 = scalar_select %p288, %s26, 0
        %s290 = sadd.s32 %s289, %s287
        %s291 = smul.addr %s290, 8
        %s292 = scalar_lea.vmem %s2, %s291
        %p293 = pneg %p110
        %p294 = pneg %p107
        %p295 = pneg %p131
        %p296 = pneg %p128
        %p297 = pneg %p152
        %p298 = pneg %p149
        %p299 = pneg %p173
        %p300 = pneg %p170
        %p301 = pneg %p201
        %p302 = pneg %p198
        %s303 = sand.u32 %s188, 1
        %s304 = scalar_lea.sflag [#allocation4], %s303
        %s305 = sand.u32 %s188, 1
        %s306 = smul.addr %s305, 4
        %s307 = scalar_lea.vmem [#allocation5], %s306
        %p308 = scmp.lt.s32.totalorder %s25, 1
        %s309 = scalar_select %p308, %s25, 1
        %p310 = scmp.lt.s32.totalorder %s26, 0
        %s311 = scalar_select %p310, %s26, 0
        %s312 = sadd.s32 %s311, %s309
        %s313 = smul.addr %s312, 8
        %s314 = scalar_lea.vmem %s0, %s313
        %p315 = scmp.lt.s32.totalorder %s25, 1
        %s316 = scalar_select %p315, %s25, 1
        %p317 = scmp.lt.s32.totalorder %s26, 0
        %s318 = scalar_select %p317, %s26, 0
        %s319 = sadd.s32 %s318, %s316
        %s320 = smul.addr %s319, 8
        %s321 = scalar_lea.vmem %s2, %s320
        %v322 = vld [vmem:[%s321] sm:$0xff]
        %v323 = vld [vmem:[%s3] sm:$0x1]
        %v324 = vld [vmem:[%s3 + $0x1] sm:$0x1]
        %v325 = vsub.f32 %v324, %v323
        %327 = vset.pattern.permute.xlu0 0
        %328 = vperm.xlu0 %327, %v322
        %v329 = vpop.permute.xlu0 %328
        %v331 = vperm.slane %v325, 0
        %v332 = vmul.f32 %v329, %v331
        %v333 = vperm.slane %v323, 0
        %v334 = vadd.f32 %v333, %v332
        %v335 = vld [vmem:[%s314] sm:$0xff]
        %v336 = vld [vmem:[#allocation2] sm:$0xff]
        %v337 = vadd.f32 %v335, %v336
        %v338 = vadd.f32 %v337, %v334
        %339 = vadd.xlane.f32.xlu0 %v338
        %v340 = vpop.xlane.xlu0 %339
        %v341 = vrcp.pop 128.0
        %v342 = vmul.f32 128.0, %v341
        %v343 = vsub.f32 1.0, %v342
        %v344 = vmul.f32 %v341, %v343
        %v345 = vadd.f32 %v341, %v344
        %vm346 = vweird.f32 %v341
        %v347 = vsel %vm346, %v341, %v345
        %v348 = vmul.f32 %v340, %v347
        %v349 = vsub.f32 %v338, %v348
        %v350 = vmul.f32 %v349, %v349
        %351 = vadd.xlane.f32.xlu0 %v350
        %v352 = vpop.xlane.xlu0 %351
        %v353 = vmul.f32 %v352, %v347
        %v354 = vadd.f32 %v353, 1e-12
        %v355 = vrsqrt.pop %v354
        %v356 = vmul.f32 %v355, %v354
        %v357 = vmul.f32 %v356, %v355
        %v358 = vmul.f32 0.5, %v357
        %v359 = vsub.f32 1.5, %v358
        %v360 = vmul.f32 %v355, %v359
        %vm361 = vweird.f32 %v354
        %vm362 = vweird.f32 %v355
        %vm363 = vmor %vm361, %vm362
        %v364 = vsel %vm363, %v355, %v360
        %v365 = vmul.f32 %v349, %v364
        %v366 = vld [vmem:[%s4] sm:$0x1]
        %v368 = vperm.slane %v366, 0
        %v370 = vmul.f32 %v365, %v368
        %v371 = vld [vmem:[%s5] sm:$0x1]
        %v373 = vperm.slane %v371, 0
        %v375 = vadd.f32 %v370, %v373
        %v376 = vpack.c.bf16 %v375, %v375
        %377 = vst [vmem:[%s307] sm:$0xf] %v376
        %s378 = sand.u32 %s188, 1
        %s379 = scalar_lea.sflag [#allocation4], %s378
        %s380 = sand.u32 %s188, 1
        %s381 = smul.addr %s380, 4
        %s382 = scalar_lea.vmem [#allocation5], %s381
        // Predicated region
        $region49: #{tpu_custom_call.1} parent=43 // pred_check
          %p383 = pneg %p198
        $region50: #{tpu_custom_call.1} parent=43 // pred_check_branch
          %385 = sbr.rel (%p383) target = $region52
        $region51: #{tpu_custom_call.1} parent=43 // pred_region
          %387 = vsyncadd %s379, 0
          %s388 = sadd.s32 %s26, %s25
          %s389 = smul.addr %s388, 4
          %s390 = scalar_lea.hbm %s6, %s389
          %s392 = sshll.u32 %s382, 4
          %s393 = int_to_ptr.vmem [resolvable:$true] %s392
          %s394 = sshll.u32 %s390, 4
          %s395 = int_to_ptr.hbm [resolvable:$true] %s394
          %397 = dma.vmem_to_hbm [thread:$0]  %s393, 64, %s395, %s379
        $region52: #{tpu_custom_call.1} parent=43 // pred_fallthru
          _
      $region44: #{tpu_custom_call.1} parent=5 // pred_fallthru
        _
      %p398 = scmp.le.s32.totalorder 2, %s16
      // Predicated region
      $region53: #{tpu_custom_call.1} parent=5 // pred_check
        %p399 = pneg %p398
      $region54: #{tpu_custom_call.1} parent=5 // pred_check_branch
        %401 = sbr.rel (%p399) target = $region56
      $region55: #{tpu_custom_call.1} parent=5 // pred_region
        %s402 = ssub.s32 %s16, 2
        // Predicated region
        $region57: #{tpu_custom_call.1} parent=55 // pred_check
          %p403 = pneg %p204
        $region58: #{tpu_custom_call.1} parent=55 // pred_check_branch
          %405 = sbr.rel (%p403) target = $region60
        $region59: #{tpu_custom_call.1} parent=55 // pred_region
          %s406 = sand.u32 %s189, 1
          %s407 = scalar_lea.sflag [#allocation4], %s406
          %s408 = sand.u32 %s189, 1
          %s409 = smul.addr %s408, 4
          %s410 = scalar_lea.vmem [#allocation5], %s409
          %412 = dma.done %s407, 64
        $region60: #{tpu_custom_call.1} parent=55 // pred_fallthru
          _
      $region56: #{tpu_custom_call.1} parent=5 // pred_fallthru
        _
    $region6: #{tpu_custom_call.1} parent=1 // loop_footer
      %s20 = sadd.s32 1, %s16
    $region7: #{tpu_custom_call.1} parent=1 // loop_footer_branch
      %15 = sbr.rel target = $region3
    $region8: #{tpu_custom_call.1} parent=1 // loop_exit
      _
    %413 = vsyncpa [#allocation3], 1
    %s414 = scalar_lea.sflag [#allocation3], 1
    %415 = vsyncpa %s414, 1
    %416 = vsyncpa [#allocation4], 1
    %s417 = scalar_lea.sflag [#allocation4], 1
    %418 = vsyncpa %s417, 1

</llo_original>
